<compile_context>
chip_gen: v6e
topology: v6e:2x2x1
jax: 0.10.0
libtpu: 0.0.40
codegen_flags: <defaults>
</compile_context>

<pallas_src>
import math
from functools import partial

import jax
import jax.numpy as jnp
from jax.experimental import pallas as pl
from jax.experimental.pallas import tpu as pltpu


_VMEM_LIMIT = 48 * 1024 * 1024   # raised scoped-VMEM limit; leaves headroom on v7x (64 MiB)


# ------------------------------ tiling helpers ------------------------------

def _sublane(dtype):
    # rows per sublane group: 8 for 32-bit, 16 for bf16/fp16, 32 for 8-bit
    return max(8, 32 // jnp.dtype(dtype).itemsize)


def _pick_tile(rows, row_bytes, sub, *, target_block=4 << 20,
               floor_block=64 << 10, min_steps=8):
    """Row tile: multiple of `sub`, block <= target_block bytes, and (when it does
    not shrink the block below floor_block bytes) at least min_steps grid steps
    so both v7x TensorCores get >= 4 steps each and the pipeline can overlap."""
    def rnd(n):
        return max(sub, (n // sub) * sub)

    budget = rnd(target_block // row_bytes)            # VMEM byte budget per block
    steps = rnd(-(-rows // min_steps))                 # ~rows / min_steps
    floor = rnd(-(-floor_block // row_bytes))          # keep per-step DMA non-trivial
    tile = min(budget, max(floor, steps))
    if tile >= rows:
        return rows                                    # one full block (== full dim is legal)
    return tile


# ----------------------------- Pallas kernels -----------------------------

def _make_ln_kernel(eps, has_w, has_b):
    """Classic LayerNorm over the last (channel) dim of each row of a (tm, C) block."""

    def kernel(*refs):
        x_ref = refs[0]
        k = 1
        w_ref = refs[k] if has_w else None
        k += int(has_w)
        b_ref = refs[k] if has_b else None
        k += int(has_b)
        o_ref = refs[k]

        x = x_ref[...].astype(jnp.float32)                     # (tm, C)
        inv_n = 1.0 / x.shape[-1]
        mu = jnp.sum(x, axis=-1, keepdims=True) * inv_n
        c = x - mu
        var = jnp.sum(c * c, axis=-1, keepdims=True) * inv_n
        y = c * jax.lax.rsqrt(var + eps)                       # rsqrt -> EUP slot
        if has_w:
            y = y * w_ref[...].astype(jnp.float32)
        if has_b:
            y = y + b_ref[...].astype(jnp.float32)
        o_ref[...] = y.astype(o_ref.dtype)

    return kernel


def _make_gn_stats_kernel(eps, inv_n, n_total, tn):
    """Pass 1 of GroupNorm(1): accumulate sum / sum-of-squares over tiled N,
    emit per-batch mean and rstd broadcast along C (lane-dense (1,1,C) outputs)."""
    masked = (n_total % tn) != 0

    def kernel(x_ref, mean_ref, rstd_ref, sum_ref, sq_ref):
        n = pl.program_id(1)

        @pl.when(n == 0)
        def _init():
            sum_ref[...] = jnp.zeros_like(sum_ref)
            sq_ref[...] = jnp.zeros_like(sq_ref)

        x = x_ref[0].astype(jnp.float32)                       # (tn, C)
        if masked:                                             # ragged last N block
            row = jax.lax.broadcasted_iota(jnp.int32, x.shape, 0)
            x = jnp.where(n * tn + row < n_total, x, 0.0)
        sum_ref[...] += jnp.sum(x, axis=0, keepdims=True)      # (1, C) partials (sublane reduce)
        sq_ref[...] += jnp.sum(x * x, axis=0, keepdims=True)

        @pl.when(n == pl.num_programs(1) - 1)
        def _finalize():
            mu = jnp.sum(sum_ref[...]) * inv_n                 # scalar (lane reduce once)
            var = jnp.sum(sq_ref[...]) * inv_n - mu * mu
            rstd = jax.lax.rsqrt(var + eps)                    # rsqrt -> EUP slot
            mean_ref[...] = jnp.broadcast_to(mu, mean_ref.shape)
            rstd_ref[...] = jnp.broadcast_to(rstd, rstd_ref.shape)

    return kernel


def _make_gn_norm_kernel(has_w, has_b):
    """Pass 2 of GroupNorm(1): (x - mean) * rstd, fused with the optional affine."""

    def kernel(*refs):
        x_ref, mean_ref, rstd_ref = refs[0], refs[1], refs[2]
        k = 3
        w_ref = refs[k] if has_w else None
        k += int(has_w)
        b_ref = refs[k] if has_b else None
        k += int(has_b)
        o_ref = refs[k]

        x = x_ref[0].astype(jnp.float32)                       # (tn, C)
        y = (x - mean_ref[0]) * rstd_ref[0]                    # (1, C) broadcasts
        if has_w:
            y = y * w_ref[0].astype(jnp.float32)
        if has_b:
            y = y + b_ref[0].astype(jnp.float32)
        o_ref[0] = y.astype(o_ref.dtype)

    return kernel


# ----------------------------- Pallas wrappers ------------------------------

def _layer_norm_lastdim(x2, params, eps, has_w, has_b):
    M, C = x2.shape
    itemsize = jnp.dtype(x2.dtype).itemsize
    sub = _sublane(x2.dtype)
    tm = _pick_tile(M, C * itemsize, sub)
    grid = (pl.cdiv(M, tm),)                                   # ragged last block is fine:
                                                               # rows are independent, padded
                                                               # rows are never written back
    in_specs = [pl.BlockSpec((tm, C), lambda i: (i, 0))]
    in_specs += [pl.BlockSpec((1, C), lambda i: (0, 0))] * len(params)

    return pl.pallas_call(
        _make_ln_kernel(eps, has_w, has_b),
        out_shape=jax.ShapeDtypeStruct((M, C), x2.dtype),
        grid_spec=pltpu.PrefetchScalarGridSpec(
            num_scalar_prefetch=0,
            grid=grid,
            in_specs=in_specs,
            out_specs=pl.BlockSpec((tm, C), lambda i: (i, 0))),
        compiler_params=pltpu.CompilerParams(
            dimension_semantics=("parallel",),
            vmem_limit_bytes=_VMEM_LIMIT),
        cost_estimate=pl.CostEstimate(
            flops=7 * M * C,
            transcendentals=M,
            bytes_accessed=2 * M * C * itemsize + 2 * C * itemsize),
    )(x2, *params)


def _group_norm1(x3, params, eps, has_w, has_b):
    B, N, C = x3.shape
    itemsize = jnp.dtype(x3.dtype).itemsize
    sub = _sublane(x3.dtype)
    tn = _pick_tile(N, C * itemsize, sub)
    nN = pl.cdiv(N, tn)
    inv_n = 1.0 / (N * C)

    # ---- pass 1: per-batch-element mean / rstd (N tiled, "arbitrary" reduction) ----
    mean, rstd = pl.pallas_call(
        _make_gn_stats_kernel(eps, inv_n, N, tn),
        out_shape=(jax.ShapeDtypeStruct((B, 1, C), jnp.float32),
                   jax.ShapeDtypeStruct((B, 1, C), jnp.float32)),
        grid_spec=pltpu.PrefetchScalarGridSpec(
            num_scalar_prefetch=0,
            grid=(B, nN),
            in_specs=[pl.BlockSpec((1, tn, C), lambda b, n: (b, n, 0))],
            out_specs=(pl.BlockSpec((1, 1, C), lambda b, n: (b, 0, 0)),
                       pl.BlockSpec((1, 1, C), lambda b, n: (b, 0, 0))),
            scratch_shapes=[pltpu.VMEM((1, C), jnp.float32),
                            pltpu.VMEM((1, C), jnp.float32)]),
        compiler_params=pltpu.CompilerParams(
            dimension_semantics=("parallel", "arbitrary"),
            vmem_limit_bytes=_VMEM_LIMIT),
        cost_estimate=pl.CostEstimate(
            flops=3 * B * N * C,
            transcendentals=B,
            bytes_accessed=B * N * C * itemsize + 2 * B * C * 4),
    )(x3)

    # ---- pass 2: normalize + fused affine ----
    params3 = [p.reshape(1, 1, C) for p in params]
    in_specs = [pl.BlockSpec((1, tn, C), lambda b, n: (b, n, 0)),
                pl.BlockSpec((1, 1, C), lambda b, n: (b, 0, 0)),
                pl.BlockSpec((1, 1, C), lambda b, n: (b, 0, 0))]
    in_specs += [pl.BlockSpec((1, 1, C), lambda b, n: (0, 0, 0))] * len(params3)

    return pl.pallas_call(
        _make_gn_norm_kernel(has_w, has_b),
        out_shape=jax.ShapeDtypeStruct((B, N, C), x3.dtype),
        grid_spec=pltpu.PrefetchScalarGridSpec(
            num_scalar_prefetch=0,
            grid=(B, nN),
            in_specs=in_specs,
            out_specs=pl.BlockSpec((1, tn, C), lambda b, n: (b, n, 0))),
        compiler_params=pltpu.CompilerParams(
            dimension_semantics=("parallel", "parallel"),
            vmem_limit_bytes=_VMEM_LIMIT),
        cost_estimate=pl.CostEstimate(
            flops=4 * B * N * C,
            transcendentals=0,
            bytes_accessed=2 * B * N * C * itemsize + 2 * B * C * 4 + 2 * C * itemsize),
    )(x3, mean, rstd, *params3)


def layer_norm_general_pallas(x, weight=None, bias=None, *,
                              normalized_dim=(-1,), eps=1e-5):
    """Pallas forward of LayerNormGeneral for channels-last inputs.

    Supported:
      normalized_dim == (-1,)                 classic LayerNorm over channels
      normalized_dim == all non-batch dims    modified LayerNorm (== GroupNorm(1))
    Affine params (if given) must be of shape (C,) with C = x.shape[-1].
    """
    nd = tuple(sorted(d % x.ndim for d in normalized_dim))
    shape = x.shape
    C = shape[-1]
    has_w, has_b = weight is not None, bias is not None

    params = []
    if has_w:
        params.append(jnp.asarray(weight).reshape(1, C))
    if has_b:
        params.append(jnp.asarray(bias).reshape(1, C))

    if nd == (x.ndim - 1,):
        # classic LayerNorm over the channel dim: rows of (M, C)
        M = math.prod(shape[:-1])
        out = _layer_norm_lastdim(x.reshape(M, C), params, eps, has_w, has_b)
        return out.reshape(shape)

    if x.ndim >= 3 and nd == tuple(range(1, x.ndim)):
        # modified LayerNorm (== GroupNorm(num_groups=1)) over all non-batch dims
        B = shape[0]
        N = math.prod(shape[1:-1])
        out = _group_norm1(x.reshape(B, N, C), params, eps, has_w, has_b)
        return out.reshape(shape)

    # TODO(synk): channels-first (B, C, H, W) configs with affine_shape=(C,1,1) need a
    # dedicated channel-axis-reduction kernel to stay lane-dense; not implemented here.
    raise NotImplementedError(f"normalized_dim={normalized_dim} not supported")


# --------------------- pure-JAX reference (for checking) ---------------------

def layer_norm_general_ref(x, weight=None, bias=None, *,
                           normalized_dim=(-1,), eps=1e-5):
    mu = jnp.mean(x, axis=normalized_dim, keepdims=True)
    c = x - mu
    s = jnp.mean(c * c, axis=normalized_dim, keepdims=True)
    y = c / jnp.sqrt(s + eps)
    if weight is not None:
        y = y * weight
    if bias is not None:
        y = y + bias
    return y


# ----------------------------------- main -----------------------------------

if __name__ == "__main__":
    key = jax.random.PRNGKey(0)
    ks = jax.random.split(key, 8)

    C = 128
    weight = 1.0 + 0.02 * jax.random.normal(ks[1], (C,), jnp.float32)
    bias = 0.01 * jax.random.normal(ks[2], (C,), jnp.float32)

    def check(x, w, b, nd, atol):
        fwd = jax.jit(partial(layer_norm_general_pallas, normalized_dim=nd, eps=1e-5))
        out = jax.block_until_ready(fwd(x, w, b))
        ref = layer_norm_general_ref(x.astype(jnp.float32), w, b,
                                     normalized_dim=nd, eps=1e-5)
        assert out.shape == x.shape, (out.shape, x.shape)
        assert bool(jnp.all(jnp.isfinite(out)))
        err = float(jnp.max(jnp.abs(out.astype(jnp.float32) - ref)))
        assert err <= atol, (nd, x.shape, str(x.dtype), err)

    # 1) classic LayerNorm over channels, scale+bias, NHWC input
    x1 = jax.random.normal(ks[0], (2, 16, 16, C), jnp.float32)
    check(x1, weight, bias, (-1,), 5e-4)

    # 2) modified LayerNorm == GroupNorm(1), scale only (bias=False), NHWC input
    check(x1, weight, None, (1, 2, 3), 5e-4)

    # 3) token-sequence layout (B, N, C), classic LayerNorm
    x3 = jax.random.normal(ks[3], (2, 64, C), jnp.float32)
    check(x3, weight, bias, (-1,), 5e-4)

    # 4) classic LayerNorm with a row count that does NOT divide the tile (ragged grid)
    x4 = jax.random.normal(ks[4], (1, 13, 16, C), jnp.float32)
    check(x4, weight, bias, (-1,), 5e-4)

    # 5) GroupNorm(1) on (B, N, C) with ragged N tiling (masked reduction block)
    x5 = jax.random.normal(ks[5], (2, 300, C), jnp.float32)
    check(x5, weight, bias, (1, 2), 5e-4)

    # 6) bf16 I/O (f32 stats in-kernel), classic LayerNorm
    x6 = x1.astype(jnp.bfloat16)
    check(x6, weight, bias, (-1,), 3e-2)

    print("KERNEL_OK")
</pallas_src>

<mosaic_0001>
module attributes {stable_mosaic.version = 11 : i64} {
  func.func @kernel(%arg0: i32, %arg1: memref<128x128xf32, #tpu.memory_space<vmem>>, %arg2: memref<1x128xf32, #tpu.memory_space<vmem>>, %arg3: memref<1x128xf32, #tpu.memory_space<vmem>>, %arg4: memref<128x128xf32, #tpu.memory_space<vmem>>) attributes {dimension_semantics = [#tpu.dimension_semantics<parallel>], iteration_bounds = array<i64: 4>, scalar_prefetch = 0 : i64, scratch_operands = 0 : i64, tpu.core_type = #tpu.core_type<tc>, window_params = [{transform_indices = @transform_0, window_bounds = array<i64: 128, 128>}, {pipeline_mode = #tpu.pipeline_mode<synchronous>, transform_indices = @transform_1, window_bounds = array<i64: 1, 128>}, {pipeline_mode = #tpu.pipeline_mode<synchronous>, transform_indices = @transform_2, window_bounds = array<i64: 1, 128>}, {transform_indices = @transform_3, window_bounds = array<i64: 128, 128>}]} {
    %c0 = arith.constant 0 : index
    %c0_0 = arith.constant 0 : index
    %0 = vector.load %arg1[%c0, %c0_0] : memref<128x128xf32, #tpu.memory_space<vmem>>, vector<128x128xf32>
    %cst = arith.constant dense<0.000000e+00> : vector<128xf32>
    %1 = vector.multi_reduction <add>, %0, %cst [1] : vector<128x128xf32> to vector<128xf32>
    %2 = vector.shape_cast %1 : vector<128xf32> to vector<128x1xf32>
    %cst_1 = arith.constant 7.812500e-03 : f32
    %3 = vector.broadcast %cst_1 : f32 to vector<128x1xf32>
    %4 = arith.mulf %2, %3 : vector<128x1xf32>
    %5 = vector.broadcast %4 : vector<128x1xf32> to vector<128x128xf32>
    %6 = arith.subf %0, %5 : vector<128x128xf32>
    %7 = arith.mulf %6, %6 : vector<128x128xf32>
    %cst_2 = arith.constant dense<0.000000e+00> : vector<128xf32>
    %8 = vector.multi_reduction <add>, %7, %cst_2 [1] : vector<128x128xf32> to vector<128xf32>
    %9 = vector.shape_cast %8 : vector<128xf32> to vector<128x1xf32>
    %cst_3 = arith.constant 7.812500e-03 : f32
    %10 = vector.broadcast %cst_3 : f32 to vector<128x1xf32>
    %11 = arith.mulf %9, %10 : vector<128x1xf32>
    %cst_4 = arith.constant 9.99999974E-6 : f32
    %12 = vector.broadcast %cst_4 : f32 to vector<128x1xf32>
    %13 = arith.addf %11, %12 : vector<128x1xf32>
    %14 = math.rsqrt %13 : vector<128x1xf32>
    %15 = vector.broadcast %14 : vector<128x1xf32> to vector<128x128xf32>
    %16 = arith.mulf %6, %15 : vector<128x128xf32>
    %c0_5 = arith.constant 0 : index
    %c0_6 = arith.constant 0 : index
    %17 = vector.load %arg2[%c0_5, %c0_6] : memref<1x128xf32, #tpu.memory_space<vmem>>, vector<1x128xf32>
    %18 = vector.broadcast %17 : vector<1x128xf32> to vector<128x128xf32>
    %19 = arith.mulf %16, %18 : vector<128x128xf32>
    %c0_7 = arith.constant 0 : index
    %c0_8 = arith.constant 0 : index
    %20 = vector.load %arg3[%c0_7, %c0_8] : memref<1x128xf32, #tpu.memory_space<vmem>>, vector<1x128xf32>
    %21 = vector.broadcast %20 : vector<1x128xf32> to vector<128x128xf32>
    %22 = arith.addf %19, %21 : vector<128x128xf32>
    %c0_9 = arith.constant 0 : index
    %c0_10 = arith.constant 0 : index
    %23 = vector.load %arg4[%c0_9, %c0_10] : memref<128x128xf32, #tpu.memory_space<vmem>>, vector<128x128xf32>
    tpu.vector_store %arg4[%c0_9, %c0_10], %22 {strides = array<i32>} : memref<128x128xf32, #tpu.memory_space<vmem>>, vector<128x128xf32>,
    return
  }
  func.func @transform_0(%arg0: i32) -> (i32, i32) {
    %c0_i32 = arith.constant 0 : i32
    %c0_i32_0 = arith.constant 0 : i32
    return %arg0, %c0_i32 : i32, i32
  }
  func.func @transform_1(%arg0: i32) -> (i32, i32) {
    %c0_i32 = arith.constant 0 : i32
    %c0_i32_0 = arith.constant 0 : i32
    %c0_i32_1 = arith.constant 0 : i32
    return %c0_i32, %c0_i32_0 : i32, i32
  }
  func.func @transform_2(%arg0: i32) -> (i32, i32) {
    %c0_i32 = arith.constant 0 : i32
    %c0_i32_0 = arith.constant 0 : i32
    %c0_i32_1 = arith.constant 0 : i32
    return %c0_i32, %c0_i32_0 : i32, i32
  }
  func.func @transform_3(%arg0: i32) -> (i32, i32) {
    %c0_i32 = arith.constant 0 : i32
    %c0_i32_0 = arith.constant 0 : i32
    return %arg0, %c0_i32 : i32, i32
  }
}

</mosaic_0001>

<llo_original>
// kernel: layer_norm_general_pallas.1
$region0: #{layer_norm_general_pallas.1}
  #allocation0 [shape = 'u32[]', space=smem, size = 0x4, offset = 0x4, fixed_abs, tag = 'smem constant byte address 0x4 - core index']
  #allocation1 [shape = 'u32[144,128]{1,0:T(1,128)}', space=vmem, size = 0x12000, scoped, tag = 'internal scratch']
  %s0 = inlined_call_operand.hbm [shape: f32[512,128], index: 0, kind: input, shape index: {}]
  %s1 = inlined_call_operand.vmem [shape: f32[1,128], index: 1, kind: input, shape index: {}]
  %s2 = inlined_call_operand.vmem [shape: f32[1,128], index: 2, kind: input, shape index: {}]
  %s3 = inlined_call_operand.hbm [shape: f32[512,128], index: 3, kind: output, shape index: {}]
  %s4 = sld [smem:[#allocation0]]
  $region49: #{layer_norm_general_pallas.1} parent=0
    _
  %s6 = ssub.s32 1, %s4
  %s7 = scalar_select 0, %s6, %s4
  $region1: #{layer_norm_general_pallas.1} parent=0
    #allocation2 [shape = 'u8[131072]{0}', space=vmem, size = 0x20000, scoped, tag = 'input window, operand 0']
    #allocation3 [shape = 's32[2]{0}', space=sflag, size = 0x8, scoped, tag = 'scoped memory for layer_norm_general_pallas.1']
    #allocation4 [shape = 's32[2]{0}', space=sflag, size = 0x8, scoped, tag = 'scoped memory for layer_norm_general_pallas.1']
    #allocation5 [shape = 'u8[131072]{0}', space=vmem, size = 0x20000, scoped, tag = 'output window, operand 0']
    %8 = vsyncpa [#allocation3], 0
    %s9 = scalar_lea.sflag [#allocation3], 1
    %10 = vsyncpa %s9, 0
    %11 = vsyncpa [#allocation4], 0
    %s12 = scalar_lea.sflag [#allocation4], 1
    %13 = vsyncpa %s12, 0
    loop: start=0, step=1, limit=6
    $region2: #{layer_norm_general_pallas.1} parent=1 // loop_pre_header
      _
    $region3: #{layer_norm_general_pallas.1} parent=1 // loop_header
      %s15 = sphi 0, %s19
      %p16 = scmp.ge.s32.totalorder %s15, 6
      %s25 = sphi 0, %s27
      %s28 = sphi 0, %s25
      %s29 = sphi 0, %s28
      %s45 = sphi 0, %s29
      %s49 = sphi 0, %s49
      %s51 = sphi 0, %s49
      %s52 = sphi 0, %s51
      %s66 = sphi 0, %s52
      %s70 = sphi 0, %s70
      %s72 = sphi 0, %s70
      %s73 = sphi 0, %s72
      %s87 = sphi 0, %s73
      %s93 = sphi 0, %s95
      %s96 = sphi 0, %s93
      %s97 = sphi 0, %s96
      %s113 = sphi 0, %s97
    $region4: #{layer_norm_general_pallas.1} parent=1 // loop_header_branch
      %18 = sbr.rel (%p16) target = $region8
    $region5: #{layer_norm_general_pallas.1} parent=1 // loop_body
      %s20 = ssub.s32 %s15, 1
      %s21 = ssub.s32 %s15, 2
      %s22 = sadd.s32 %s15, 1
      %s23 = ssub.s32 %s15, %s22
      %p24 = scmp.eq.s32.totalorder %s23, 0
      %s26 = sadd.s32 %s25, 1
      %s27 = scalar_select %p24, %s25, %s26
      %p30 = pneg %p24
      %p31 = scmp.eq.s32.totalorder %s15, 3
      %p32 = por %p30, %p31
      %p33 = scmp.ne.s32.totalorder %s25, %s28
      %p34 = scmp.eq.s32.totalorder %s15, 0
      %p35 = por %p33, %p34
      %p36 = scmp.ne.s32.totalorder %s25, %s28
      %p37 = scmp.eq.s32.totalorder %s20, 3
      %p38 = por %p36, %p37
      %p39 = scmp.ne.s32.totalorder %s28, %s29
      %p40 = scmp.eq.s32.totalorder %s20, 0
      %p41 = por %p39, %p40
      %p42 = scmp.ne.s32.totalorder %s28, %s29
      %p43 = scmp.eq.s32.totalorder %s21, 3
      %p44 = por %p42, %p43
      %p46 = scmp.ne.s32.totalorder %s29, %s45
      %p47 = scmp.eq.s32.totalorder %s21, 0
      %p48 = por %p46, %p47
      %s50 = sadd.s32 %s49, 1
      %p53 = scmp.eq.s32.totalorder %s15, 3
      %p54 = scmp.ne.s32.totalorder %s49, %s51
      %p55 = scmp.eq.s32.totalorder %s15, 0
      %p56 = por %p54, %p55
      %p57 = scmp.ne.s32.totalorder %s49, %s51
      %p58 = scmp.eq.s32.totalorder %s20, 3
      %p59 = por %p57, %p58
      %p60 = scmp.ne.s32.totalorder %s51, %s52
      %p61 = scmp.eq.s32.totalorder %s20, 0
      %p62 = por %p60, %p61
      %p63 = scmp.ne.s32.totalorder %s51, %s52
      %p64 = scmp.eq.s32.totalorder %s21, 3
      %p65 = por %p63, %p64
      %p67 = scmp.ne.s32.totalorder %s52, %s66
      %p68 = scmp.eq.s32.totalorder %s21, 0
      %p69 = por %p67, %p68
      %s71 = sadd.s32 %s70, 1
      %p74 = scmp.eq.s32.totalorder %s15, 3
      %p75 = scmp.ne.s32.totalorder %s70, %s72
      %p76 = scmp.eq.s32.totalorder %s15, 0
      %p77 = por %p75, %p76
      %p78 = scmp.ne.s32.totalorder %s70, %s72
      %p79 = scmp.eq.s32.totalorder %s20, 3
      %p80 = por %p78, %p79
      %p81 = scmp.ne.s32.totalorder %s72, %s73
      %p82 = scmp.eq.s32.totalorder %s20, 0
      %p83 = por %p81, %p82
      %p84 = scmp.ne.s32.totalorder %s72, %s73
      %p85 = scmp.eq.s32.totalorder %s21, 3
      %p86 = por %p84, %p85
      %p88 = scmp.ne.s32.totalorder %s73, %s87
      %p89 = scmp.eq.s32.totalorder %s21, 0
      %p90 = por %p88, %p89
      %s91 = ssub.s32 %s15, %s22
      %p92 = scmp.eq.s32.totalorder %s91, 0
      %s94 = sadd.s32 %s93, 1
      %s95 = scalar_select %p92, %s93, %s94
      %p98 = pneg %p92
      %p99 = scmp.eq.s32.totalorder %s15, 3
      %p100 = por %p98, %p99
      %p101 = scmp.ne.s32.totalorder %s93, %s96
      %p102 = scmp.eq.s32.totalorder %s15, 0
      %p103 = por %p101, %p102
      %p104 = scmp.ne.s32.totalorder %s93, %s96
      %p105 = scmp.eq.s32.totalorder %s20, 3
      %p106 = por %p104, %p105
      %p107 = scmp.ne.s32.totalorder %s96, %s97
      %p108 = scmp.eq.s32.totalorder %s20, 0
      %p109 = por %p107, %p108
      %p110 = scmp.ne.s32.totalorder %s96, %s97
      %p111 = scmp.eq.s32.totalorder %s21, 3
      %p112 = por %p110, %p111
      %p114 = scmp.ne.s32.totalorder %s97, %s113
      %p115 = scmp.eq.s32.totalorder %s21, 0
      %p116 = por %p114, %p115
      %p117 = scmp.le.s32.totalorder 1, %s15
      %p118 = scmp.lt.s32.totalorder %s15, 5
      %p119 = pnand %p117, %p118
      %p120 = pneg %p119
      // Predicated region
      $region9: #{layer_norm_general_pallas.1} parent=5 // pred_check
        _
      $region10: #{layer_norm_general_pallas.1} parent=5 // pred_check_branch
        %122 = sbr.rel (%p119) target = $region12
      $region11: #{layer_norm_general_pallas.1} parent=5 // pred_region
        %s123 = ssub.s32 %s15, 1
        // Predicated region
        $region13: #{layer_norm_general_pallas.1} parent=11 // pred_check
          %p124 = pneg %p62
        $region14: #{layer_norm_general_pallas.1} parent=11 // pred_check_branch
          %126 = sbr.rel (%p124) target = $region16
        $region15: #{layer_norm_general_pallas.1} parent=11 // pred_region
          _
        $region16: #{layer_norm_general_pallas.1} parent=11 // pred_fallthru
          _
        // Predicated region
        $region17: #{layer_norm_general_pallas.1} parent=11 // pred_check
          %p127 = pneg %p83
        $region18: #{layer_norm_general_pallas.1} parent=11 // pred_check_branch
          %129 = sbr.rel (%p127) target = $region20
        $region19: #{layer_norm_general_pallas.1} parent=11 // pred_region
          _
        $region20: #{layer_norm_general_pallas.1} parent=11 // pred_fallthru
          _
      $region12: #{layer_norm_general_pallas.1} parent=5 // pred_fallthru
        _
      %p130 = scmp.lt.s32.totalorder %s15, 4
      // Predicated region
      $region21: #{layer_norm_general_pallas.1} parent=5 // pred_check
        %p131 = pneg %p130
      $region22: #{layer_norm_general_pallas.1} parent=5 // pred_check_branch
        %133 = sbr.rel (%p131) target = $region24
      $region23: #{layer_norm_general_pallas.1} parent=5 // pred_region
        // Predicated region
        $region25: #{layer_norm_general_pallas.1} parent=23 // pred_check
          %p134 = pneg %p35
        $region26: #{layer_norm_general_pallas.1} parent=23 // pred_check_branch
          %136 = sbr.rel (%p134) target = $region28
        $region27: #{layer_norm_general_pallas.1} parent=23 // pred_region
          %s137 = sand.u32 %s25, 1
          %s138 = scalar_lea.sflag [#allocation3], %s137
          %s139 = sand.u32 %s25, 1
          %s140 = smul.addr %s139, 128
          %s141 = scalar_lea.vmem [#allocation2], %s140
          %s142 = smul.u32 16, %s15
          %s144 = ssub.s32 2048, 2048
          %145 = vsyncadd %s138, %s144
          %s146 = smul.addr %s142, 128
          %s147 = scalar_lea.hbm %s0, %s146
          %s148 = sshll.u32 %s141, 4
          %s149 = int_to_ptr.vmem [resolvable:$true] %s148
          %154 = dma.hbm_to_vmem [thread:$0]  %s147, 2048, %s149, %s138, 128, 128, 8
        $region28: #{layer_norm_general_pallas.1} parent=23 // pred_fallthru
          _
      $region24: #{layer_norm_general_pallas.1} parent=5 // pred_fallthru
        _
      %p155 = scmp.le.s32.totalorder 1, %s15
      %p156 = scmp.lt.s32.totalorder %s15, 5
      %p157 = pnand %p155, %p156
      %p158 = pneg %p157
      // Predicated region
      $region29: #{layer_norm_general_pallas.1} parent=5 // pred_check
        _
      $region30: #{layer_norm_general_pallas.1} parent=5 // pred_check_branch
        %160 = sbr.rel (%p157) target = $region32
      $region31: #{layer_norm_general_pallas.1} parent=5 // pred_region
        %s161 = ssub.s32 %s15, 1
        %s162 = sand.u32 %s28, 1
        %s163 = scalar_lea.sflag [#allocation3], %s162
        %s164 = sand.u32 %s28, 1
        %s165 = smul.addr %s164, 128
        %s166 = scalar_lea.vmem [#allocation2], %s165
        // Predicated region
        $region33: #{layer_norm_general_pallas.1} parent=31 // pred_check
          %p167 = pneg %p41
        $region34: #{layer_norm_general_pallas.1} parent=31 // pred_check_branch
          %169 = sbr.rel (%p167) target = $region36
        $region35: #{layer_norm_general_pallas.1} parent=31 // pred_region
          %170 = dma.done %s163, 2048
        $region36: #{layer_norm_general_pallas.1} parent=31 // pred_fallthru
          _
        %s171 = sand.u32 %s28, 1
        %s172 = scalar_lea.sflag [#allocation3], %s171
        %s173 = sand.u32 %s28, 1
        %s174 = smul.addr %s173, 128
        %s175 = scalar_lea.vmem [#allocation2], %s174
        %p176 = pneg %p41
        %p177 = pneg %p38
        %p178 = pneg %p62
        %p179 = pneg %p59
        %p180 = pneg %p83
        %p181 = pneg %p80
        %p182 = pneg %p109
        %p183 = pneg %p106
        %s184 = sand.u32 %s96, 1
        %s185 = scalar_lea.sflag [#allocation4], %s184
        %s186 = sand.u32 %s96, 1
        %s187 = smul.addr %s186, 128
        %s188 = scalar_lea.vmem [#allocation5], %s187
        %s189 = smul.u32 16, %s20
        %s190 = smul.u32 16, %s20
        %v191 = vld [vmem:[%s166] sm:$0xff]
        %v192 = vld [vmem:[%s166 + $0x8] sm:$0xff]
        %v193 = vld [vmem:[%s166 + $0x10] sm:$0xff]
        %v194 = vld [vmem:[%s166 + $0x18] sm:$0xff]
        %v195 = vld [vmem:[%s166 + $0x20] sm:$0xff]
        %v196 = vld [vmem:[%s166 + $0x28] sm:$0xff]
        %v197 = vld [vmem:[%s166 + $0x30] sm:$0xff]
        %v198 = vld [vmem:[%s166 + $0x38] sm:$0xff]
        %v199 = vld [vmem:[%s166 + $0x40] sm:$0xff]
        %v200 = vld [vmem:[%s166 + $0x48] sm:$0xff]
        %v201 = vld [vmem:[%s166 + $0x50] sm:$0xff]
        %v202 = vld [vmem:[%s166 + $0x58] sm:$0xff]
        %v203 = vld [vmem:[%s166 + $0x60] sm:$0xff]
        %v204 = vld [vmem:[%s166 + $0x68] sm:$0xff]
        %v205 = vld [vmem:[%s166 + $0x70] sm:$0xff]
        %v206 = vld [vmem:[%s166 + $0x78] sm:$0xff]
        %207 = vadd.xlane.f32.xlu0 %v191
        %v208 = vpop.xlane.xlu0 %207
        %209 = vadd.xlane.f32.xlu0 %v192
        %v210 = vpop.xlane.xlu0 %209
        %211 = vadd.xlane.f32.xlu0 %v193
        %v212 = vpop.xlane.xlu0 %211
        %213 = vadd.xlane.f32.xlu0 %v194
        %v214 = vpop.xlane.xlu0 %213
        %215 = vadd.xlane.f32.xlu0 %v195
        %v216 = vpop.xlane.xlu0 %215
        %217 = vadd.xlane.f32.xlu0 %v196
        %v218 = vpop.xlane.xlu0 %217
        %219 = vadd.xlane.f32.xlu0 %v197
        %v220 = vpop.xlane.xlu0 %219
        %221 = vadd.xlane.f32.xlu0 %v198
        %v222 = vpop.xlane.xlu0 %221
        %223 = vadd.xlane.f32.xlu0 %v199
        %v224 = vpop.xlane.xlu0 %223
        %225 = vadd.xlane.f32.xlu0 %v200
        %v226 = vpop.xlane.xlu0 %225
        %227 = vadd.xlane.f32.xlu0 %v201
        %v228 = vpop.xlane.xlu0 %227
        %229 = vadd.xlane.f32.xlu0 %v202
        %v230 = vpop.xlane.xlu0 %229
        %231 = vadd.xlane.f32.xlu0 %v203
        %v232 = vpop.xlane.xlu0 %231
        %233 = vadd.xlane.f32.xlu0 %v204
        %v234 = vpop.xlane.xlu0 %233
        %235 = vadd.xlane.f32.xlu0 %v205
        %v236 = vpop.xlane.xlu0 %235
        %237 = vadd.xlane.f32.xlu0 %v206
        %v238 = vpop.xlane.xlu0 %237
        %v239 = vmul.f32 %v208, 0.0078125
        %v240 = vmul.f32 %v210, 0.0078125
        %v241 = vmul.f32 %v212, 0.0078125
        %v242 = vmul.f32 %v214, 0.0078125
        %v243 = vmul.f32 %v216, 0.0078125
        %v244 = vmul.f32 %v218, 0.0078125
        %v245 = vmul.f32 %v220, 0.0078125
        %v246 = vmul.f32 %v222, 0.0078125
        %v247 = vmul.f32 %v224, 0.0078125
        %v248 = vmul.f32 %v226, 0.0078125
        %v249 = vmul.f32 %v228, 0.0078125
        %v250 = vmul.f32 %v230, 0.0078125
        %v251 = vmul.f32 %v232, 0.0078125
        %v252 = vmul.f32 %v234, 0.0078125
        %v253 = vmul.f32 %v236, 0.0078125
        %v254 = vmul.f32 %v238, 0.0078125
        %v255 = vsub.f32 %v191, %v239
        %v256 = vsub.f32 %v192, %v240
        %v257 = vsub.f32 %v193, %v241
        %v258 = vsub.f32 %v194, %v242
        %v259 = vsub.f32 %v195, %v243
        %v260 = vsub.f32 %v196, %v244
        %v261 = vsub.f32 %v197, %v245
        %v262 = vsub.f32 %v198, %v246
        %v263 = vsub.f32 %v199, %v247
        %v264 = vsub.f32 %v200, %v248
        %v265 = vsub.f32 %v201, %v249
        %v266 = vsub.f32 %v202, %v250
        %v267 = vsub.f32 %v203, %v251
        %v268 = vsub.f32 %v204, %v252
        %v269 = vsub.f32 %v205, %v253
        %v270 = vsub.f32 %v206, %v254
        %v271 = vmul.f32 %v255, %v255
        %v272 = vmul.f32 %v256, %v256
        %v273 = vmul.f32 %v257, %v257
        %v274 = vmul.f32 %v258, %v258
        %v275 = vmul.f32 %v259, %v259
        %v276 = vmul.f32 %v260, %v260
        %v277 = vmul.f32 %v261, %v261
        %v278 = vmul.f32 %v262, %v262
        %v279 = vmul.f32 %v263, %v263
        %v280 = vmul.f32 %v264, %v264
        %v281 = vmul.f32 %v265, %v265
        %v282 = vmul.f32 %v266, %v266
        %v283 = vmul.f32 %v267, %v267
        %v284 = vmul.f32 %v268, %v268
        %v285 = vmul.f32 %v269, %v269
        %v286 = vmul.f32 %v270, %v270
        %287 = vadd.xlane.f32.xlu0 %v271
        %v288 = vpop.xlane.xlu0 %287
        %289 = vadd.xlane.f32.xlu0 %v272
        %v290 = vpop.xlane.xlu0 %289
        %291 = vadd.xlane.f32.xlu0 %v273
        %v292 = vpop.xlane.xlu0 %291
        %293 = vadd.xlane.f32.xlu0 %v274
        %v294 = vpop.xlane.xlu0 %293
        %295 = vadd.xlane.f32.xlu0 %v275
        %v296 = vpop.xlane.xlu0 %295
        %297 = vadd.xlane.f32.xlu0 %v276
        %v298 = vpop.xlane.xlu0 %297
        %299 = vadd.xlane.f32.xlu0 %v277
        %v300 = vpop.xlane.xlu0 %299
        %301 = vadd.xlane.f32.xlu0 %v278
        %v302 = vpop.xlane.xlu0 %301
        %303 = vadd.xlane.f32.xlu0 %v279
        %v304 = vpop.xlane.xlu0 %303
        %305 = vadd.xlane.f32.xlu0 %v280
        %v306 = vpop.xlane.xlu0 %305
        %307 = vadd.xlane.f32.xlu0 %v281
        %v308 = vpop.xlane.xlu0 %307
        %309 = vadd.xlane.f32.xlu0 %v282
        %v310 = vpop.xlane.xlu0 %309
        %311 = vadd.xlane.f32.xlu0 %v283
        %v312 = vpop.xlane.xlu0 %311
        %313 = vadd.xlane.f32.xlu0 %v284
        %v314 = vpop.xlane.xlu0 %313
        %315 = vadd.xlane.f32.xlu0 %v285
        %v316 = vpop.xlane.xlu0 %315
        %317 = vadd.xlane.f32.xlu0 %v286
        %v318 = vpop.xlane.xlu0 %317
        %v319 = vmul.f32 %v288, 0.0078125
        %v320 = vmul.f32 %v290, 0.0078125
        %v321 = vmul.f32 %v292, 0.0078125
        %v322 = vmul.f32 %v294, 0.0078125
        %v323 = vmul.f32 %v296, 0.0078125
        %v324 = vmul.f32 %v298, 0.0078125
        %v325 = vmul.f32 %v300, 0.0078125
        %v326 = vmul.f32 %v302, 0.0078125
        %v327 = vmul.f32 %v304, 0.0078125
        %v328 = vmul.f32 %v306, 0.0078125
        %v329 = vmul.f32 %v308, 0.0078125
        %v330 = vmul.f32 %v310, 0.0078125
        %v331 = vmul.f32 %v312, 0.0078125
        %v332 = vmul.f32 %v314, 0.0078125
        %v333 = vmul.f32 %v316, 0.0078125
        %v334 = vmul.f32 %v318, 0.0078125
        %v335 = vadd.f32 %v319, 1e-05
        %v336 = vadd.f32 %v320, 1e-05
        %v337 = vadd.f32 %v321, 1e-05
        %v338 = vadd.f32 %v322, 1e-05
        %v339 = vadd.f32 %v323, 1e-05
        %v340 = vadd.f32 %v324, 1e-05
        %v341 = vadd.f32 %v325, 1e-05
        %v342 = vadd.f32 %v326, 1e-05
        %v343 = vadd.f32 %v327, 1e-05
        %v344 = vadd.f32 %v328, 1e-05
        %v345 = vadd.f32 %v329, 1e-05
        %v346 = vadd.f32 %v330, 1e-05
        %v347 = vadd.f32 %v331, 1e-05
        %v348 = vadd.f32 %v332, 1e-05
        %v349 = vadd.f32 %v333, 1e-05
        %v350 = vadd.f32 %v334, 1e-05
        %v351 = vrsqrt.pop %v335
        %v352 = vrsqrt.pop %v336
        %v353 = vrsqrt.pop %v337
        %v354 = vrsqrt.pop %v338
        %v355 = vrsqrt.pop %v339
        %v356 = vrsqrt.pop %v340
        %v357 = vrsqrt.pop %v341
        %v358 = vrsqrt.pop %v342
        %v359 = vrsqrt.pop %v343
        %v360 = vrsqrt.pop %v344
        %v361 = vrsqrt.pop %v345
        %v362 = vrsqrt.pop %v346
        %v363 = vrsqrt.pop %v347
        %v364 = vrsqrt.pop %v348
        %v365 = vrsqrt.pop %v349
        %v366 = vrsqrt.pop %v350
        %v367 = vmul.f32 %v255, %v351
        %v368 = vmul.f32 %v256, %v352
        %v369 = vmul.f32 %v257, %v353
        %v370 = vmul.f32 %v258, %v354
        %v371 = vmul.f32 %v259, %v355
        %v372 = vmul.f32 %v260, %v356
        %v373 = vmul.f32 %v261, %v357
        %v374 = vmul.f32 %v262, %v358
        %v375 = vmul.f32 %v263, %v359
        %v376 = vmul.f32 %v264, %v360
        %v377 = vmul.f32 %v265, %v361
        %v378 = vmul.f32 %v266, %v362
        %v379 = vmul.f32 %v267, %v363
        %v380 = vmul.f32 %v268, %v364
        %v381 = vmul.f32 %v269, %v365
        %v382 = vmul.f32 %v270, %v366
        %v383 = vld [vmem:[%s1] sm:$0x1]
        %v385 = vlaneseq
        %v386 = vshrl.u32 %v385, 7
        %v387 = vsub.s32 0, %v386
        %v388 = vrot.slane %v383, %v387
        %v390 = vmul.f32 %v367, %v388
        %v391 = vmul.f32 %v368, %v388
        %v392 = vmul.f32 %v369, %v388
        %v393 = vmul.f32 %v370, %v388
        %v394 = vmul.f32 %v371, %v388
        %v395 = vmul.f32 %v372, %v388
        %v396 = vmul.f32 %v373, %v388
        %v397 = vmul.f32 %v374, %v388
        %v398 = vmul.f32 %v375, %v388
        %v399 = vmul.f32 %v376, %v388
        %v400 = vmul.f32 %v377, %v388
        %v401 = vmul.f32 %v378, %v388
        %v402 = vmul.f32 %v379, %v388
        %v403 = vmul.f32 %v380, %v388
        %v404 = vmul.f32 %v381, %v388
        %v405 = vmul.f32 %v382, %v388
        %v406 = vld [vmem:[%s2] sm:$0x1]
        %v408 = vlaneseq
        %v409 = vshrl.u32 %v408, 7
        %v410 = vsub.s32 0, %v409
        %v411 = vrot.slane %v406, %v410
        %v413 = vadd.f32 %v390, %v411
        %v414 = vadd.f32 %v391, %v411
        %v415 = vadd.f32 %v392, %v411
        %v416 = vadd.f32 %v393, %v411
        %v417 = vadd.f32 %v394, %v411
        %v418 = vadd.f32 %v395, %v411
        %v419 = vadd.f32 %v396, %v411
        %v420 = vadd.f32 %v397, %v411
        %v421 = vadd.f32 %v398, %v411
        %v422 = vadd.f32 %v399, %v411
        %v423 = vadd.f32 %v400, %v411
        %v424 = vadd.f32 %v401, %v411
        %v425 = vadd.f32 %v402, %v411
        %v426 = vadd.f32 %v403, %v411
        %v427 = vadd.f32 %v404, %v411
        %v428 = vadd.f32 %v405, %v411
        %429 = vst [vmem:[%s188] sm:$0xff] %v413
        %430 = vst [vmem:[%s188 + $0x8] sm:$0xff] %v414
        %431 = vst [vmem:[%s188 + $0x10] sm:$0xff] %v415
        %432 = vst [vmem:[%s188 + $0x18] sm:$0xff] %v416
        %433 = vst [vmem:[%s188 + $0x20] sm:$0xff] %v417
        %434 = vst [vmem:[%s188 + $0x28] sm:$0xff] %v418
        %435 = vst [vmem:[%s188 + $0x30] sm:$0xff] %v419
        %436 = vst [vmem:[%s188 + $0x38] sm:$0xff] %v420
        %437 = vst [vmem:[%s188 + $0x40] sm:$0xff] %v421
        %438 = vst [vmem:[%s188 + $0x48] sm:$0xff] %v422
        %439 = vst [vmem:[%s188 + $0x50] sm:$0xff] %v423
        %440 = vst [vmem:[%s188 + $0x58] sm:$0xff] %v424
        %441 = vst [vmem:[%s188 + $0x60] sm:$0xff] %v425
        %442 = vst [vmem:[%s188 + $0x68] sm:$0xff] %v426
        %443 = vst [vmem:[%s188 + $0x70] sm:$0xff] %v427
        %444 = vst [vmem:[%s188 + $0x78] sm:$0xff] %v428
        %s445 = sand.u32 %s96, 1
        %s446 = scalar_lea.sflag [#allocation4], %s445
        %s447 = sand.u32 %s96, 1
        %s448 = smul.addr %s447, 128
        %s449 = scalar_lea.vmem [#allocation5], %s448
        // Predicated region
        $region37: #{layer_norm_general_pallas.1} parent=31 // pred_check
          %p450 = pneg %p106
        $region38: #{layer_norm_general_pallas.1} parent=31 // pred_check_branch
          %452 = sbr.rel (%p450) target = $region40
        $region39: #{layer_norm_general_pallas.1} parent=31 // pred_region
          %s453 = smul.u32 16, %s20
          %s455 = ssub.s32 2048, 2048
          %456 = vsyncadd %s446, %s455
          %s457 = smul.addr %s453, 128
          %s458 = scalar_lea.hbm %s3, %s457
          %s459 = sshll.u32 %s449, 4
          %s460 = int_to_ptr.vmem [resolvable:$true] %s459
          %465 = dma.vmem_to_hbm [thread:$0]  %s460, 2048, %s458, %s446, 128, 128, 8
        $region40: #{layer_norm_general_pallas.1} parent=31 // pred_fallthru
          _
      $region32: #{layer_norm_general_pallas.1} parent=5 // pred_fallthru
        _
      %p466 = scmp.le.s32.totalorder 2, %s15
      // Predicated region
      $region41: #{layer_norm_general_pallas.1} parent=5 // pred_check
        %p467 = pneg %p466
      $region42: #{layer_norm_general_pallas.1} parent=5 // pred_check_branch
        %469 = sbr.rel (%p467) target = $region44
      $region43: #{layer_norm_general_pallas.1} parent=5 // pred_region
        %s470 = ssub.s32 %s15, 2
        // Predicated region
        $region45: #{layer_norm_general_pallas.1} parent=43 // pred_check
          %p471 = pneg %p112
        $region46: #{layer_norm_general_pallas.1} parent=43 // pred_check_branch
          %473 = sbr.rel (%p471) target = $region48
        $region47: #{layer_norm_general_pallas.1} parent=43 // pred_region
          %s474 = sand.u32 %s97, 1
          %s475 = scalar_lea.sflag [#allocation4], %s474
          %s476 = sand.u32 %s97, 1
          %s477 = smul.addr %s476, 128
          %s478 = scalar_lea.vmem [#allocation5], %s477
          %479 = dma.done %s475, 2048
        $region48: #{layer_norm_general_pallas.1} parent=43 // pred_fallthru
          _
      $region44: #{layer_norm_general_pallas.1} parent=5 // pred_fallthru
        _
    $region6: #{layer_norm_general_pallas.1} parent=1 // loop_footer
      %s19 = sadd.s32 1, %s15
    $region7: #{layer_norm_general_pallas.1} parent=1 // loop_footer_branch
      %14 = sbr.rel target = $region3
    $region8: #{layer_norm_general_pallas.1} parent=1 // loop_exit
      _
    %480 = vsyncpa [#allocation3], 1
    %s481 = scalar_lea.sflag [#allocation3], 1
    %482 = vsyncpa %s481, 1
    %483 = vsyncpa [#allocation4], 1
    %s484 = scalar_lea.sflag [#allocation4], 1
    %485 = vsyncpa %s484, 1

</llo_original>
